<compile_context>
chip_gen: v7x
topology: tpu7x:2x2x1
jax: 0.10.0
libtpu: 0.0.40
codegen_flags: <defaults>
</compile_context>

<pallas_src>
import functools

import jax
import jax.numpy as jnp
import numpy as np
from jax.experimental import pallas as pl
from jax.experimental.pallas import tpu as pltpu


def _round_up(x, m):
    return ((x + m - 1) // m) * m


def _largest_divisor_tile(dim, candidates):
    for c in candidates:
        if dim % c == 0:
            return c
    return candidates[-1]


_CONTRACT_LAST = (((1,), (1,)), ((), ()))  # x[m,k] . w[n,k] -> [m,n]


def _epilogue(acc_f32, b_ref, *, weight_gain, activation, use_bias):
    y = acc_f32 * jnp.float32(weight_gain)
    if use_bias:
        y = y + b_ref[...]  # bias stays float32
    if activation == "relu":
        y = jnp.maximum(y, 0.0)
    else:  # "lrelu"
        y = jnp.where(y >= 0.0, y, 0.2 * y)
    return y


def _fc_kernel_nok(*refs, weight_gain, activation, use_bias):
    """No reduction grid axis: one dot + fused epilogue straight into o_ref."""
    if use_bias:
        x_ref, w_ref, b_ref, o_ref = refs
    else:
        x_ref, w_ref, o_ref = refs
        b_ref = None
    acc = jax.lax.dot_general(x_ref[...], w_ref[...], _CONTRACT_LAST,
                              preferred_element_type=jnp.float32)
    o_ref[...] = _epilogue(acc, b_ref, weight_gain=weight_gain,
                           activation=activation,
                           use_bias=use_bias).astype(o_ref.dtype)


def _fc_kernel_k(*refs, weight_gain, activation, use_bias):
    """3-D grid (i, j, k) with K innermost ('arbitrary'); f32 VMEM accumulator."""
    if use_bias:
        x_ref, w_ref, b_ref, o_ref, acc_ref = refs
    else:
        x_ref, w_ref, o_ref, acc_ref = refs
        b_ref = None
    k = pl.program_id(2)
    prod = jax.lax.dot_general(x_ref[...], w_ref[...], _CONTRACT_LAST,
                               preferred_element_type=jnp.float32)

    @pl.when(k == 0)
    def _():
        acc_ref[...] = prod          # no separate zero-init pass

    @pl.when(k != 0)
    def _():
        acc_ref[...] += prod

    @pl.when(k == pl.num_programs(2) - 1)
    def _():
        o_ref[...] = _epilogue(acc_ref[...], b_ref, weight_gain=weight_gain,
                               activation=activation,
                               use_bias=use_bias).astype(o_ref.dtype)


def sparse_fully_connected(x, weight, bias=None, *, lr_multiplier=1.0,
                           activation="lrelu", compute_dtype=None):
    """x: [N, C_in] sparse-tensor features, weight: [C_out, C_in], bias: [C_out] or None."""
    if activation not in ("relu", "lrelu"):
        raise ValueError(f"Unsupported activation: {activation}")

    n, c_in = x.shape
    c_out, c_in_w = weight.shape
    assert c_in_w == c_in
    weight_gain = float(lr_multiplier) / float(np.sqrt(c_in))
    use_bias = bias is not None

    # MXU input dtype. Default mirrors the reference (weight cast to x.dtype).
    # compute_dtype=jnp.bfloat16 halves HBM traffic (changes numerics).
    mxu_dtype = jnp.dtype(compute_dtype) if compute_dtype is not None else jnp.dtype(x.dtype)
    itemsize = mxu_dtype.itemsize
    out_dtype = x.dtype

    # ---- lane-dense, tile-aligned padded shapes ---------------------------
    cin_p = _round_up(c_in, 128)
    cout_p = _round_up(c_out, 128)

    tm = min(512, _round_up(n, 128))
    if tm == 512 and _round_up(n, tm) // tm == 1:
        tm = 256                      # >= 2 row tiles so dual-TC parts can shard
    n_p = _round_up(n, tm)
    i_blocks = n_p // tm

    xp = x.astype(mxu_dtype) if x.dtype != mxu_dtype else x
    if (n_p, cin_p) != (n, c_in):
        xp = jnp.pad(xp, ((0, n_p - n), (0, cin_p - c_in)))

    # Weight stays [C_out, C_in]: no wrapper transpose, single cast/pad.
    wp = weight.astype(mxu_dtype) if weight.dtype != mxu_dtype else weight
    if (cout_p, cin_p) != (c_out, c_in):
        wp = jnp.pad(wp, ((0, cout_p - c_out), (0, cin_p - c_in)))

    inputs = [xp, wp]
    if use_bias:
        b2 = bias.astype(jnp.float32).reshape(1, c_out)
        if cout_p != c_out:
            b2 = jnp.pad(b2, ((0, 0), (0, cout_p - c_out)))
        inputs.append(b2)

    x_bytes = n_p * cin_p * itemsize
    w_bytes = cout_p * cin_p * itemsize
    b_bytes = cout_p * 4 if use_bias else 0
    o_bytes = n_p * cout_p * jnp.dtype(out_dtype).itemsize
    flops = 2 * n_p * cin_p * cout_p

    kwargs = dict(weight_gain=weight_gain, activation=activation, use_bias=use_bias)

    single_k = cin_p <= 2048          # whole reduction dim fits one VMEM block
    if single_k:
        # Keep the whole padded weight resident when it is small (typical FC).
        if w_bytes <= 8 * 1024 * 1024 and cout_p <= 2048:
            tn = cout_p
        else:
            tn = _largest_divisor_tile(cout_p, (512, 256, 128))
        j_blocks = cout_p // tn

        if j_blocks == 1 or w_bytes * i_blocks <= x_bytes * j_blocks:
            # i outer, j inner: x streamed once, weight re-streamed per row tile
            # (weight fetched exactly once when j_blocks == 1: constant block idx).
            grid = (i_blocks, j_blocks)
            x_map = lambda i, j: (i, 0)
            w_map = lambda i, j: (j, 0)
            b_map = lambda i, j: (0, j)
            o_map = lambda i, j: (i, j)
            streamed = x_bytes + w_bytes * (i_blocks if j_blocks > 1 else 1)
        else:
            # j outer, i inner: weight streamed once, x re-streamed per col tile.
            grid = (j_blocks, i_blocks)
            x_map = lambda j, i: (i, 0)
            w_map = lambda j, i: (j, 0)
            b_map = lambda j, i: (0, j)
            o_map = lambda j, i: (i, j)
            streamed = w_bytes + x_bytes * j_blocks

        in_specs = [pl.BlockSpec((tm, cin_p), x_map),
                    pl.BlockSpec((tn, cin_p), w_map)]
        if use_bias:
            in_specs.append(pl.BlockSpec((1, tn), b_map))
        out_specs = pl.BlockSpec((tm, tn), o_map)
        kernel = functools.partial(_fc_kernel_nok, **kwargs)
        scratch_shapes = []
        dim_sem = ("parallel", "parallel")
    else:
        tn = _largest_divisor_tile(cout_p, (512, 256, 128))
        tk = _largest_divisor_tile(cin_p, (1024, 512, 256, 128))
        j_blocks = cout_p // tn
        grid = (i_blocks, j_blocks, cin_p // tk)
        in_specs = [pl.BlockSpec((tm, tk), lambda i, j, k: (i, k)),
                    pl.BlockSpec((tn, tk), lambda i, j, k: (j, k))]
        if use_bias:
            in_specs.append(pl.BlockSpec((1, tn), lambda i, j, k: (0, j)))
        out_specs = pl.BlockSpec((tm, tn), lambda i, j, k: (i, j))
        kernel = functools.partial(_fc_kernel_k, **kwargs)
        scratch_shapes = [pltpu.VMEM((tm, tn), jnp.float32)]
        dim_sem = ("parallel", "parallel", "arbitrary")
        streamed = x_bytes * j_blocks + w_bytes * i_blocks

    cost = pl.CostEstimate(flops=flops, transcendentals=0,
                           bytes_accessed=streamed + b_bytes + o_bytes)

    out_p = pl.pallas_call(
        kernel,
        out_shape=jax.ShapeDtypeStruct((n_p, cout_p), out_dtype),
        grid_spec=pltpu.PrefetchScalarGridSpec(
            num_scalar_prefetch=0,
            grid=grid,
            in_specs=in_specs,
            out_specs=out_specs,
            scratch_shapes=scratch_shapes,
        ),
        compiler_params=pltpu.CompilerParams(
            dimension_semantics=dim_sem,
            vmem_limit_bytes=48 * 1024 * 1024,   # fits v7x 64 MiB/TC; ample on v5e/v6e
        ),
        cost_estimate=cost,
    )(*inputs)

    if (n_p, cout_p) != (n, c_out):
        out_p = out_p[:n, :c_out]
    return out_p


def _reference(x, weight, bias, *, lr_multiplier=1.0, activation="lrelu"):
    weight_gain = lr_multiplier / np.sqrt(weight.shape[1])
    w = weight.astype(x.dtype) * weight_gain
    y = x @ w.T
    if bias is not None:
        y = y + bias
    if activation == "relu":
        return jnp.maximum(y, 0.0)
    return jnp.where(y >= 0.0, y, 0.2 * y)


if __name__ == "__main__":
    key = jax.random.PRNGKey(0)
    k1, k2, k3, k4, k5, k6 = jax.random.split(key, 6)

    # --- case 1: lrelu + bias, small FC (weight-resident / no-K path) -------
    N, c_in, c_out = 128, 32, 64
    lr_mult, bias_init = 1.0, 0.0
    x = jax.random.normal(k1, (N, c_in), dtype=jnp.float32)
    w = jax.random.normal(k2, (c_out, c_in), dtype=jnp.float32) / lr_mult
    b = jnp.full((c_out,), np.float32(bias_init), dtype=jnp.float32)
    out = jax.block_until_ready(
        sparse_fully_connected(x, w, b, lr_multiplier=lr_mult, activation="lrelu"))
    ref = _reference(x, w, b, lr_multiplier=lr_mult, activation="lrelu")
    np.testing.assert_allclose(np.asarray(out), np.asarray(ref), rtol=1e-5, atol=1e-5)

    # --- case 2: relu, no bias, non-aligned N / channels (padding path) -----
    x2 = jax.random.normal(k3, (100, 48), dtype=jnp.float32)
    w2 = jax.random.normal(k4, (96, 48), dtype=jnp.float32)
    out2 = jax.block_until_ready(
        sparse_fully_connected(x2, w2, None, lr_multiplier=1.0, activation="relu"))
    ref2 = _reference(x2, w2, None, lr_multiplier=1.0, activation="relu")
    np.testing.assert_allclose(np.asarray(out2), np.asarray(ref2), rtol=1e-5, atol=1e-5)

    # --- case 3: large reduction dim -> K-tiled path with f32 accumulator ---
    lr3 = 0.5
    x3 = jax.random.normal(k5, (200, 2560), dtype=jnp.float32)
    w3 = jax.random.normal(k6, (256, 2560), dtype=jnp.float32) / lr3
    b3 = jnp.full((256,), np.float32(0.1), dtype=jnp.float32)
    out3 = jax.block_until_ready(
        sparse_fully_connected(x3, w3, b3, lr_multiplier=lr3, activation="lrelu"))
    ref3 = _reference(x3, w3, b3, lr_multiplier=lr3, activation="lrelu")
    np.testing.assert_allclose(np.asarray(out3), np.asarray(ref3), rtol=1e-4, atol=1e-4)

    print("KERNEL_OK")
</pallas_src>

<mosaic_0001>
module attributes {stable_mosaic.version = 11 : i64} {
  func.func @_fc_kernel_nok(%arg0: i32, %arg1: i32, %arg2: memref<128x128xf32, #tpu.memory_space<vmem>>, %arg3: memref<128x128xf32, #tpu.memory_space<vmem>>, %arg4: memref<1x128xf32, #tpu.memory_space<vmem>>, %arg5: memref<128x128xf32, #tpu.memory_space<vmem>>) attributes {dimension_semantics = [#tpu.dimension_semantics<parallel>, #tpu.dimension_semantics<parallel>], iteration_bounds = array<i64: 1, 1>, scalar_prefetch = 0 : i64, scratch_operands = 0 : i64, tpu.core_type = #tpu.core_type<tc>, window_params = [{transform_indices = @transform_0, window_bounds = array<i64: 128, 128>}, {transform_indices = @transform_1, window_bounds = array<i64: 128, 128>}, {transform_indices = @transform_2, window_bounds = array<i64: 1, 128>}, {transform_indices = @transform_3, window_bounds = array<i64: 128, 128>}]} {
    %c0 = arith.constant 0 : index
    %c0_0 = arith.constant 0 : index
    %0 = vector.load %arg2[%c0, %c0_0] : memref<128x128xf32, #tpu.memory_space<vmem>>, vector<128x128xf32>
    %c0_1 = arith.constant 0 : index
    %c0_2 = arith.constant 0 : index
    %1 = vector.load %arg3[%c0_1, %c0_2] : memref<128x128xf32, #tpu.memory_space<vmem>>, vector<128x128xf32>
    %cst = arith.constant dense<0.000000e+00> : vector<128x128xf32>
    %2 = tpu.matmul %0, %1, %cst {dimension_numbers = #tpu.dot_dimension_numbers<[1], [1], [0], [0], [0, 0, 1, 0], [], []>} : vector<128x128xf32>, vector<128x128xf32>, vector<128x128xf32> -> vector<128x128xf32>
    %cst_3 = arith.constant 0.176776692 : f32
    %3 = vector.broadcast %cst_3 : f32 to vector<128x128xf32>
    %4 = arith.mulf %2, %3 : vector<128x128xf32>
    %c0_4 = arith.constant 0 : index
    %c0_5 = arith.constant 0 : index
    %5 = vector.load %arg4[%c0_4, %c0_5] : memref<1x128xf32, #tpu.memory_space<vmem>>, vector<1x128xf32>
    %6 = vector.broadcast %5 : vector<1x128xf32> to vector<128x128xf32>
    %7 = arith.addf %4, %6 : vector<128x128xf32>
    %cst_6 = arith.constant 0.000000e+00 : f32
    %8 = vector.broadcast %cst_6 : f32 to vector<128x128xf32>
    %9 = arith.cmpf oge, %7, %8 : vector<128x128xf32>
    %cst_7 = arith.constant 2.000000e-01 : f32
    %10 = vector.broadcast %cst_7 : f32 to vector<128x128xf32>
    %11 = arith.mulf %10, %7 : vector<128x128xf32>
    %12 = arith.select %9, %7, %11 : vector<128x128xi1>, vector<128x128xf32>
    %c0_8 = arith.constant 0 : index
    %c0_9 = arith.constant 0 : index
    %13 = vector.load %arg5[%c0_8, %c0_9] : memref<128x128xf32, #tpu.memory_space<vmem>>, vector<128x128xf32>
    tpu.vector_store %arg5[%c0_8, %c0_9], %12 {strides = array<i32>} : memref<128x128xf32, #tpu.memory_space<vmem>>, vector<128x128xf32>,
    return
  }
  func.func @transform_0(%arg0: i32, %arg1: i32) -> (i32, i32) {
    %c0_i32 = arith.constant 0 : i32
    %c0_i32_0 = arith.constant 0 : i32
    return %arg0, %c0_i32 : i32, i32
  }
  func.func @transform_1(%arg0: i32, %arg1: i32) -> (i32, i32) {
    %c0_i32 = arith.constant 0 : i32
    %c0_i32_0 = arith.constant 0 : i32
    return %arg1, %c0_i32 : i32, i32
  }
  func.func @transform_2(%arg0: i32, %arg1: i32) -> (i32, i32) {
    %c0_i32 = arith.constant 0 : i32
    %c0_i32_0 = arith.constant 0 : i32
    return %c0_i32, %arg1 : i32, i32
  }
  func.func @transform_3(%arg0: i32, %arg1: i32) -> (i32, i32) {
    %c0_i32 = arith.constant 0 : i32
    return %arg0, %arg1 : i32, i32
  }
}

</mosaic_0001>

<llo_original>
// kernel: tpu_custom_call.1
$region0: #{tpu_custom_call.1}
  #allocation0 [shape = 'u32[]', space=smem, size = 0x4, offset = 0x4, fixed_abs, tag = 'smem constant byte address 0x4 - core index']
  #allocation1 [shape = 'u32[144,128]{1,0:T(1,128)}', space=vmem, size = 0x12000, scoped, tag = 'internal scratch']
  %s0 = inlined_call_operand.hbm [shape: f32[128,128], index: 0, kind: input, shape index: {}]
  %s1 = inlined_call_operand.hbm [shape: f32[128,128], index: 1, kind: input, shape index: {}]
  %s2 = inlined_call_operand.vmem [shape: f32[1,128], index: 2, kind: input, shape index: {}]
  %s3 = inlined_call_operand.hbm [shape: f32[128,128], index: 3, kind: output, shape index: {}]
  %s4 = sld [smem:[#allocation0]]
  $region30: #{tpu_custom_call.1} parent=0
    _
  %s6 = ssub.s32 1, %s4
  %s7 = scalar_select 0, %s6, %s4
  $region1: #{tpu_custom_call.1} parent=0
    #allocation2 [shape = 'u8[65536]{0}', space=vmem, size = 0x10000, scoped, tag = 'input window, operand 0, single buffered']
    #allocation3 [shape = 's32[1]{0}', space=sflag, size = 0x4, scoped, tag = 'scoped memory for tpu_custom_call.1']
    #allocation4 [shape = 's32[1]{0}', space=sflag, size = 0x4, scoped, tag = 'scoped memory for tpu_custom_call.1']
    #allocation5 [shape = 'u8[65536]{0}', space=vmem, size = 0x10000, scoped, tag = 'input window, operand 1, single buffered']
    #allocation6 [shape = 's32[1]{0}', space=sflag, size = 0x4, scoped, tag = 'scoped memory for tpu_custom_call.1']
    #allocation7 [shape = 'u8[65536]{0}', space=vmem, size = 0x10000, scoped, tag = 'output window, operand 0, single buffered']
    %8 = vsyncpa [#allocation3], 0
    %9 = vsyncpa [#allocation6], 0
    %10 = vsyncpa [#allocation4], 0
    // Predicated region
    $region2: #{tpu_custom_call.1} parent=1 // pred_check
      _
    $region3: #{tpu_custom_call.1} parent=1 // pred_check_branch
      %12 = sbr.rel (0) target = $region5
    $region4: #{tpu_custom_call.1} parent=1 // pred_region
      %s14 = ssub.s32 2048, 2048
      %15 = vsyncadd [#allocation3], %s14
      %s16 = sshll.u32 [#allocation2], 4
      %s17 = int_to_ptr.vmem [resolvable:$true] %s16
      %22 = dma.hbm_to_vmem [thread:$0]  %s0, 2048, %s17, [#allocation3], 128, 128, 8
    $region5: #{tpu_custom_call.1} parent=1 // pred_fallthru
      _
    // Predicated region
    $region6: #{tpu_custom_call.1} parent=1 // pred_check
      _
    $region7: #{tpu_custom_call.1} parent=1 // pred_check_branch
      %24 = sbr.rel (0) target = $region9
    $region8: #{tpu_custom_call.1} parent=1 // pred_region
      %s26 = ssub.s32 2048, 2048
      %27 = vsyncadd [#allocation6], %s26
      %s28 = sshll.u32 [#allocation5], 4
      %s29 = int_to_ptr.vmem [resolvable:$true] %s28
      %34 = dma.hbm_to_vmem [thread:$0]  %s1, 2048, %s29, [#allocation6], 128, 128, 8
    $region9: #{tpu_custom_call.1} parent=1 // pred_fallthru
      _
    // Predicated region
    $region10: #{tpu_custom_call.1} parent=1 // pred_check
      _
    $region11: #{tpu_custom_call.1} parent=1 // pred_check_branch
      %36 = sbr.rel (0) target = $region13
    $region12: #{tpu_custom_call.1} parent=1 // pred_region
      _
    $region13: #{tpu_custom_call.1} parent=1 // pred_fallthru
      _
    // Predicated region
    $region14: #{tpu_custom_call.1} parent=1 // pred_check
      _
    $region15: #{tpu_custom_call.1} parent=1 // pred_check_branch
      %38 = sbr.rel (0) target = $region17
    $region16: #{tpu_custom_call.1} parent=1 // pred_region
      %39 = dma.done [#allocation3], 2048
    $region17: #{tpu_custom_call.1} parent=1 // pred_fallthru
      _
    // Predicated region
    $region18: #{tpu_custom_call.1} parent=1 // pred_check
      _
    $region19: #{tpu_custom_call.1} parent=1 // pred_check_branch
      %41 = sbr.rel (0) target = $region21
    $region20: #{tpu_custom_call.1} parent=1 // pred_region
      %42 = dma.done [#allocation6], 2048
    $region21: #{tpu_custom_call.1} parent=1 // pred_fallthru
      _
    %v43 = vld [vmem:[#allocation2] sm:$0xff]
    %v44 = vld [vmem:[#allocation2 + $0x8] sm:$0xff]
    %v45 = vld [vmem:[#allocation2 + $0x10] sm:$0xff]
    %v46 = vld [vmem:[#allocation2 + $0x18] sm:$0xff]
    %v47 = vld [vmem:[#allocation2 + $0x20] sm:$0xff]
    %v48 = vld [vmem:[#allocation2 + $0x28] sm:$0xff]
    %v49 = vld [vmem:[#allocation2 + $0x30] sm:$0xff]
    %v50 = vld [vmem:[#allocation2 + $0x38] sm:$0xff]
    %v51 = vld [vmem:[#allocation2 + $0x40] sm:$0xff]
    %v52 = vld [vmem:[#allocation2 + $0x48] sm:$0xff]
    %v53 = vld [vmem:[#allocation2 + $0x50] sm:$0xff]
    %v54 = vld [vmem:[#allocation2 + $0x58] sm:$0xff]
    %v55 = vld [vmem:[#allocation2 + $0x60] sm:$0xff]
    %v56 = vld [vmem:[#allocation2 + $0x68] sm:$0xff]
    %v57 = vld [vmem:[#allocation2 + $0x70] sm:$0xff]
    %v58 = vld [vmem:[#allocation2 + $0x78] sm:$0xff]
    %v59 = vld [vmem:[#allocation5] sm:$0xff]
    %v60 = vld [vmem:[#allocation5 + $0x8] sm:$0xff]
    %v61 = vld [vmem:[#allocation5 + $0x10] sm:$0xff]
    %v62 = vld [vmem:[#allocation5 + $0x18] sm:$0xff]
    %v63 = vld [vmem:[#allocation5 + $0x20] sm:$0xff]
    %v64 = vld [vmem:[#allocation5 + $0x28] sm:$0xff]
    %v65 = vld [vmem:[#allocation5 + $0x30] sm:$0xff]
    %v66 = vld [vmem:[#allocation5 + $0x38] sm:$0xff]
    %v67 = vld [vmem:[#allocation5 + $0x40] sm:$0xff]
    %v68 = vld [vmem:[#allocation5 + $0x48] sm:$0xff]
    %v69 = vld [vmem:[#allocation5 + $0x50] sm:$0xff]
    %v70 = vld [vmem:[#allocation5 + $0x58] sm:$0xff]
    %v71 = vld [vmem:[#allocation5 + $0x60] sm:$0xff]
    %v72 = vld [vmem:[#allocation5 + $0x68] sm:$0xff]
    %v73 = vld [vmem:[#allocation5 + $0x70] sm:$0xff]
    %v74 = vld [vmem:[#allocation5 + $0x78] sm:$0xff]
    %75 = vmatprep.subr.mxu0 0.0
    %76 = vmatpush1.xpose.msra.mxu0 %v59
    %77 = vmatprep.subr.mxu0 0.0
    %78 = vmatpush1.xpose.msra.mxu0 %v60
    %79 = vmatprep.subr.mxu0 0.0
    %80 = vmatpush1.xpose.msra.mxu0 %v61
    %81 = vmatprep.subr.mxu0 0.0
    %82 = vmatpush1.xpose.msra.mxu0 %v62
    %83 = vmatprep.subr.mxu0 0.0
    %84 = vmatpush1.xpose.msra.mxu0 %v63
    %85 = vmatprep.subr.mxu0 0.0
    %86 = vmatpush1.xpose.msra.mxu0 %v64
    %87 = vmatprep.subr.mxu0 0.0
    %88 = vmatpush1.xpose.msra.mxu0 %v65
    %89 = vmatprep.subr.mxu0 0.0
    %90 = vmatpush1.xpose.msra.mxu0 %v66
    %91 = vmatprep.subr.mxu0 0.0
    %92 = vmatpush1.xpose.msra.mxu0 %v67
    %93 = vmatprep.subr.mxu0 0.0
    %94 = vmatpush1.xpose.msra.mxu0 %v68
    %95 = vmatprep.subr.mxu0 0.0
    %96 = vmatpush1.xpose.msra.mxu0 %v69
    %97 = vmatprep.subr.mxu0 0.0
    %98 = vmatpush1.xpose.msra.mxu0 %v70
    %99 = vmatprep.subr.mxu0 0.0
    %100 = vmatpush1.xpose.msra.mxu0 %v71
    %101 = vmatprep.subr.mxu0 0.0
    %102 = vmatpush1.xpose.msra.mxu0 %v72
    %103 = vmatprep.subr.mxu0 0.0
    %104 = vmatpush1.xpose.msra.mxu0 %v73
    %105 = vmatprep.subr.mxu0 0.0
    %106 = vmatpush1.xpose.msra.mxu0 %v74
    %107 = vmatprep.subr.mxu0 0.0
    %108 = vmatpush1.xpose.msra.mxu0 0.0
    %109 = vmatprep.subr.mxu0 0.0
    %110 = vmatpush1.xpose.msra.mxu0 0.0
    %111 = vmatprep.subr.mxu0 0.0
    %112 = vmatpush1.xpose.msra.mxu0 0.0
    %113 = vmatprep.subr.mxu0 0.0
    %114 = vmatpush1.xpose.msra.mxu0 0.0
    %115 = vmatprep.subr.mxu0 0.0
    %116 = vmatpush1.xpose.msra.mxu0 0.0
    %117 = vmatprep.subr.mxu0 0.0
    %118 = vmatpush1.xpose.msra.mxu0 0.0
    %119 = vmatprep.subr.mxu0 0.0
    %120 = vmatpush1.xpose.msra.mxu0 0.0
    %121 = vmatprep.subr.mxu0 0.0
    %122 = vmatpush1.xpose.msra.mxu0 0.0
    %123 = vmatprep.subr.mxu0 0.0
    %124 = vmatpush1.xpose.msra.mxu0 0.0
    %125 = vmatprep.subr.mxu0 0.0
    %126 = vmatpush1.xpose.msra.mxu0 0.0
    %127 = vmatprep.subr.mxu0 0.0
    %128 = vmatpush1.xpose.msra.mxu0 0.0
    %129 = vmatprep.subr.mxu0 0.0
    %130 = vmatpush1.xpose.msra.mxu0 0.0
    %131 = vmatprep.subr.mxu0 0.0
    %132 = vmatpush1.xpose.msra.mxu0 0.0
    %133 = vmatprep.subr.mxu0 0.0
    %134 = vmatpush1.xpose.msra.mxu0 0.0
    %135 = vmatprep.subr.mxu0 0.0
    %136 = vmatpush1.xpose.msra.mxu0 0.0
    %137 = vmatprep.subr.mxu0 0.0
    %138 = vmatpush1.xpose.msra.mxu0 0.0
    %139 = vmatprep.mubr.f32.mxu0 0.0
    %140 = vmatmul.mubr.f32.gmra.mrb[0].mxu0 %v43
    %v141 = vpop.f32.mrb[0].mxu0
    %v142 = vadd.f32 0.0, %v141
    %v143 = vpop.f32.mrb[0].mxu0
    %144 = vmatprep.mubr.f32.mxu0 0.0
    %145 = vmatmul.mubr.f32.gmra.mrb[0].mxu0 %v44
    %v146 = vpop.f32.mrb[0].mxu0
    %v147 = vadd.f32 0.0, %v146
    %v148 = vpop.f32.mrb[0].mxu0
    %149 = vmatprep.mubr.f32.mxu0 0.0
    %150 = vmatmul.mubr.f32.gmra.mrb[0].mxu0 %v45
    %v151 = vpop.f32.mrb[0].mxu0
    %v152 = vadd.f32 0.0, %v151
    %v153 = vpop.f32.mrb[0].mxu0
    %154 = vmatprep.mubr.f32.mxu0 0.0
    %155 = vmatmul.mubr.f32.gmra.mrb[0].mxu0 %v46
    %v156 = vpop.f32.mrb[0].mxu0
    %v157 = vadd.f32 0.0, %v156
    %v158 = vpop.f32.mrb[0].mxu0
    %159 = vmatprep.mubr.f32.mxu0 0.0
    %160 = vmatmul.mubr.f32.gmra.mrb[0].mxu0 %v47
    %v161 = vpop.f32.mrb[0].mxu0
    %v162 = vadd.f32 0.0, %v161
    %v163 = vpop.f32.mrb[0].mxu0
    %164 = vmatprep.mubr.f32.mxu0 0.0
    %165 = vmatmul.mubr.f32.gmra.mrb[0].mxu0 %v48
    %v166 = vpop.f32.mrb[0].mxu0
    %v167 = vadd.f32 0.0, %v166
    %v168 = vpop.f32.mrb[0].mxu0
    %169 = vmatprep.mubr.f32.mxu0 0.0
    %170 = vmatmul.mubr.f32.gmra.mrb[0].mxu0 %v49
    %v171 = vpop.f32.mrb[0].mxu0
    %v172 = vadd.f32 0.0, %v171
    %v173 = vpop.f32.mrb[0].mxu0
    %174 = vmatprep.mubr.f32.mxu0 0.0
    %175 = vmatmul.mubr.f32.gmra.mrb[0].mxu0 %v50
    %v176 = vpop.f32.mrb[0].mxu0
    %v177 = vadd.f32 0.0, %v176
    %v178 = vpop.f32.mrb[0].mxu0
    %179 = vmatprep.mubr.f32.mxu0 0.0
    %180 = vmatmul.mubr.f32.gmra.mrb[0].mxu0 %v51
    %v181 = vpop.f32.mrb[0].mxu0
    %v182 = vadd.f32 0.0, %v181
    %v183 = vpop.f32.mrb[0].mxu0
    %184 = vmatprep.mubr.f32.mxu0 0.0
    %185 = vmatmul.mubr.f32.gmra.mrb[0].mxu0 %v52
    %v186 = vpop.f32.mrb[0].mxu0
    %v187 = vadd.f32 0.0, %v186
    %v188 = vpop.f32.mrb[0].mxu0
    %189 = vmatprep.mubr.f32.mxu0 0.0
    %190 = vmatmul.mubr.f32.gmra.mrb[0].mxu0 %v53
    %v191 = vpop.f32.mrb[0].mxu0
    %v192 = vadd.f32 0.0, %v191
    %v193 = vpop.f32.mrb[0].mxu0
    %194 = vmatprep.mubr.f32.mxu0 0.0
    %195 = vmatmul.mubr.f32.gmra.mrb[0].mxu0 %v54
    %v196 = vpop.f32.mrb[0].mxu0
    %v197 = vadd.f32 0.0, %v196
    %v198 = vpop.f32.mrb[0].mxu0
    %199 = vmatprep.mubr.f32.mxu0 0.0
    %200 = vmatmul.mubr.f32.gmra.mrb[0].mxu0 %v55
    %v201 = vpop.f32.mrb[0].mxu0
    %v202 = vadd.f32 0.0, %v201
    %v203 = vpop.f32.mrb[0].mxu0
    %204 = vmatprep.mubr.f32.mxu0 0.0
    %205 = vmatmul.mubr.f32.gmra.mrb[0].mxu0 %v56
    %v206 = vpop.f32.mrb[0].mxu0
    %v207 = vadd.f32 0.0, %v206
    %v208 = vpop.f32.mrb[0].mxu0
    %209 = vmatprep.mubr.f32.mxu0 0.0
    %210 = vmatmul.mubr.f32.gmra.mrb[0].mxu0 %v57
    %v211 = vpop.f32.mrb[0].mxu0
    %v212 = vadd.f32 0.0, %v211
    %v213 = vpop.f32.mrb[0].mxu0
    %214 = vmatprep.mubr.f32.mxu0 0.0
    %215 = vmatmul.mubr.f32.gmra.mrb[0].mxu0 %v58
    %v216 = vpop.f32.mrb[0].mxu0
    %v217 = vadd.f32 0.0, %v216
    %v218 = vpop.f32.mrb[0].mxu0
    %219 = vdwg.mxu0
    %v220 = vmul.f32 %v142, 0.17677669
    %v221 = vmul.f32 %v147, 0.17677669
    %v222 = vmul.f32 %v152, 0.17677669
    %v223 = vmul.f32 %v157, 0.17677669
    %v224 = vmul.f32 %v162, 0.17677669
    %v225 = vmul.f32 %v167, 0.17677669
    %v226 = vmul.f32 %v172, 0.17677669
    %v227 = vmul.f32 %v177, 0.17677669
    %v228 = vmul.f32 %v182, 0.17677669
    %v229 = vmul.f32 %v187, 0.17677669
    %v230 = vmul.f32 %v192, 0.17677669
    %v231 = vmul.f32 %v197, 0.17677669
    %v232 = vmul.f32 %v202, 0.17677669
    %v233 = vmul.f32 %v207, 0.17677669
    %v234 = vmul.f32 %v212, 0.17677669
    %v235 = vmul.f32 %v217, 0.17677669
    %v236 = vld [vmem:[%s2] sm:$0x1]
    %v238 = vlaneseq
    %v239 = vshrl.u32 %v238, 7
    %v240 = vsub.s32 0, %v239
    %v241 = vrot.slane %v236, %v240
    %v243 = vadd.f32 %v220, %v241
    %v244 = vadd.f32 %v221, %v241
    %v245 = vadd.f32 %v222, %v241
    %v246 = vadd.f32 %v223, %v241
    %v247 = vadd.f32 %v224, %v241
    %v248 = vadd.f32 %v225, %v241
    %v249 = vadd.f32 %v226, %v241
    %v250 = vadd.f32 %v227, %v241
    %v251 = vadd.f32 %v228, %v241
    %v252 = vadd.f32 %v229, %v241
    %v253 = vadd.f32 %v230, %v241
    %v254 = vadd.f32 %v231, %v241
    %v255 = vadd.f32 %v232, %v241
    %v256 = vadd.f32 %v233, %v241
    %v257 = vadd.f32 %v234, %v241
    %v258 = vadd.f32 %v235, %v241
    %vm259 = vcmp.ge.f32.partialorder %v243, 0.0
    %vm260 = vcmp.ge.f32.partialorder %v244, 0.0
    %vm261 = vcmp.ge.f32.partialorder %v245, 0.0
    %vm262 = vcmp.ge.f32.partialorder %v246, 0.0
    %vm263 = vcmp.ge.f32.partialorder %v247, 0.0
    %vm264 = vcmp.ge.f32.partialorder %v248, 0.0
    %vm265 = vcmp.ge.f32.partialorder %v249, 0.0
    %vm266 = vcmp.ge.f32.partialorder %v250, 0.0
    %vm267 = vcmp.ge.f32.partialorder %v251, 0.0
    %vm268 = vcmp.ge.f32.partialorder %v252, 0.0
    %vm269 = vcmp.ge.f32.partialorder %v253, 0.0
    %vm270 = vcmp.ge.f32.partialorder %v254, 0.0
    %vm271 = vcmp.ge.f32.partialorder %v255, 0.0
    %vm272 = vcmp.ge.f32.partialorder %v256, 0.0
    %vm273 = vcmp.ge.f32.partialorder %v257, 0.0
    %vm274 = vcmp.ge.f32.partialorder %v258, 0.0
    %v275 = vmul.f32 %v243, 0.2
    %v276 = vmul.f32 %v244, 0.2
    %v277 = vmul.f32 %v245, 0.2
    %v278 = vmul.f32 %v246, 0.2
    %v279 = vmul.f32 %v247, 0.2
    %v280 = vmul.f32 %v248, 0.2
    %v281 = vmul.f32 %v249, 0.2
    %v282 = vmul.f32 %v250, 0.2
    %v283 = vmul.f32 %v251, 0.2
    %v284 = vmul.f32 %v252, 0.2
    %v285 = vmul.f32 %v253, 0.2
    %v286 = vmul.f32 %v254, 0.2
    %v287 = vmul.f32 %v255, 0.2
    %v288 = vmul.f32 %v256, 0.2
    %v289 = vmul.f32 %v257, 0.2
    %v290 = vmul.f32 %v258, 0.2
    %v291 = vsel %vm259, %v243, %v275
    %v292 = vsel %vm260, %v244, %v276
    %v293 = vsel %vm261, %v245, %v277
    %v294 = vsel %vm262, %v246, %v278
    %v295 = vsel %vm263, %v247, %v279
    %v296 = vsel %vm264, %v248, %v280
    %v297 = vsel %vm265, %v249, %v281
    %v298 = vsel %vm266, %v250, %v282
    %v299 = vsel %vm267, %v251, %v283
    %v300 = vsel %vm268, %v252, %v284
    %v301 = vsel %vm269, %v253, %v285
    %v302 = vsel %vm270, %v254, %v286
    %v303 = vsel %vm271, %v255, %v287
    %v304 = vsel %vm272, %v256, %v288
    %v305 = vsel %vm273, %v257, %v289
    %v306 = vsel %vm274, %v258, %v290
    %307 = vst [vmem:[#allocation7] sm:$0xff] %v291
    %308 = vst [vmem:[#allocation7 + $0x8] sm:$0xff] %v292
    %309 = vst [vmem:[#allocation7 + $0x10] sm:$0xff] %v293
    %310 = vst [vmem:[#allocation7 + $0x18] sm:$0xff] %v294
    %311 = vst [vmem:[#allocation7 + $0x20] sm:$0xff] %v295
    %312 = vst [vmem:[#allocation7 + $0x28] sm:$0xff] %v296
    %313 = vst [vmem:[#allocation7 + $0x30] sm:$0xff] %v297
    %314 = vst [vmem:[#allocation7 + $0x38] sm:$0xff] %v298
    %315 = vst [vmem:[#allocation7 + $0x40] sm:$0xff] %v299
    %316 = vst [vmem:[#allocation7 + $0x48] sm:$0xff] %v300
    %317 = vst [vmem:[#allocation7 + $0x50] sm:$0xff] %v301
    %318 = vst [vmem:[#allocation7 + $0x58] sm:$0xff] %v302
    %319 = vst [vmem:[#allocation7 + $0x60] sm:$0xff] %v303
    %320 = vst [vmem:[#allocation7 + $0x68] sm:$0xff] %v304
    %321 = vst [vmem:[#allocation7 + $0x70] sm:$0xff] %v305
    %322 = vst [vmem:[#allocation7 + $0x78] sm:$0xff] %v306
    // Predicated region
    $region22: #{tpu_custom_call.1} parent=1 // pred_check
      _
    $region23: #{tpu_custom_call.1} parent=1 // pred_check_branch
      %324 = sbr.rel (0) target = $region25
    $region24: #{tpu_custom_call.1} parent=1 // pred_region
      %s326 = ssub.s32 2048, 2048
      %327 = vsyncadd [#allocation4], %s326
      %s328 = sshll.u32 [#allocation7], 4
      %s329 = int_to_ptr.vmem [resolvable:$true] %s328
      %334 = dma.vmem_to_hbm [thread:$0]  %s329, 2048, %s3, [#allocation4], 128, 128, 8
    $region25: #{tpu_custom_call.1} parent=1 // pred_fallthru
      _
    // Predicated region
    $region26: #{tpu_custom_call.1} parent=1 // pred_check
      _
    $region27: #{tpu_custom_call.1} parent=1 // pred_check_branch
      %336 = sbr.rel (0) target = $region29
    $region28: #{tpu_custom_call.1} parent=1 // pred_region
      %337 = dma.done [#allocation4], 2048
    $region29: #{tpu_custom_call.1} parent=1 // pred_fallthru
      _
    %338 = vsyncpa [#allocation3], 1
    %339 = vsyncpa [#allocation6], 1
    %340 = vsyncpa [#allocation4], 1

</llo_original>
